<compile_context>
chip_gen: v7x
topology: tpu7x:2x2x1
jax: 0.10.0
libtpu: 0.0.40
codegen_flags: <defaults>
</compile_context>

<pallas_src>
import jax
import jax.numpy as jnp
from jax import lax
from jax.experimental import pallas as pl
from jax.experimental.pallas import tpu as pltpu

# ----------------------------- model config ---------------------------------
NUM_DISEASES  = 10
EMBEDDING_DIM = 16
INPUT_DIM     = 48                     # number of feature columns (ex-'병명')
HIDDEN_DIMS   = [256, 128, 128, 64, 64]
BOTTLENECK    = 1
OUTPUT_DIM    = 4
BATCH         = 8
BN_EPS        = 1e-5

FEAT_PAD = INPUT_DIM + EMBEDDING_DIM   # 64: fused layer-1 K dimension

# Tightly packed weight-slab layout (bf16, 384 x 256):
#   rows   0.. 63, cols   0..255 : fused W1  (feature rows 0..47, emb@W1 rows 48..57)
#   rows  64..319, cols   0..127 : W2' (256 x 128)
#   rows  64..191, cols 128..255 : W3' (128 x 128)
#   rows 192..319, cols 128..191 : W4' (128 x  64)
#   rows 320..383, cols   0.. 63 : W5' ( 64 x  64)
R_W1, R_W2, R_W3, R_W4, R_W5 = 0, 64, 64, 192, 320
W_ROWS, W_COLS = 384, 256

# Vector-slab rows (f32): 0..4 = b1..b5', 5 = Wb'^T, 6 = bb', 7 = Wo row, 8 = bo.
V_ROWS = 16


# ------------------------------ Pallas kernel --------------------------------
def _mlp_kernel(x_ref, w_ref, vec_ref, out_ref):
    f32, bf16 = jnp.float32, jnp.bfloat16
    tb = out_ref.shape[0]
    vec = vec_ref[...]                                         # (16, 256) f32

    # Input block: lanes 0..47 = features, lanes 48..63 = disease id (broadcast).
    # Build the one-hot in lanes 48..63 with a pure elementwise compare.
    x = x_ref[...]                                             # (tb, 64) f32
    lane = lax.broadcasted_iota(jnp.int32, (tb, FEAT_PAD), 1).astype(f32)
    xin = jnp.where(lane < float(INPUT_DIM), x,
                    (x == lane - float(INPUT_DIM)).astype(f32))

    # Fused layer 1: single (tb,64)@(64,256) bf16 MXU dot, f32 accumulate.
    h = jnp.dot(xin.astype(bf16), w_ref[R_W1:R_W1 + FEAT_PAD, 0:256],
                preferred_element_type=f32)
    h = jnp.maximum(h + vec[0:1, 0:256], 0.0)                  # + b1, ReLU

    # Layers 2..5 (eval BatchNorm affine already folded into W/b; Dropout = id).
    h = jnp.maximum(jnp.dot(h.astype(bf16), w_ref[R_W2:R_W2 + 256, 0:128],
                            preferred_element_type=f32) + vec[1:2, 0:128], 0.0)
    h = jnp.maximum(jnp.dot(h.astype(bf16), w_ref[R_W3:R_W3 + 128, 128:256],
                            preferred_element_type=f32) + vec[2:3, 0:128], 0.0)
    h = jnp.maximum(jnp.dot(h.astype(bf16), w_ref[R_W4:R_W4 + 128, 128:192],
                            preferred_element_type=f32) + vec[3:4, 0:64], 0.0)
    h = jnp.maximum(jnp.dot(h.astype(bf16), w_ref[R_W5:R_W5 + 64, 0:64],
                            preferred_element_type=f32) + vec[4:5, 0:64], 0.0)

    # Bottleneck Linear (out_features=1): VPU multiply + XLU reduce, no MXU.
    z = jnp.sum(h * vec[5:6, 0:64], axis=-1, keepdims=True) + vec[6:7, 0:1]

    # Softplus (PyTorch default: beta=1, threshold=20).
    z = jnp.where(z > 20.0, z, jnp.log1p(jnp.exp(jnp.minimum(z, 20.0))))

    # Output Linear (in_features=1): broadcast outer product on VPU.
    out_ref[...] = z * vec[7:8, 0:OUTPUT_DIM] + vec[8:9, 0:OUTPUT_DIM]


# ------------------------------- parameters ----------------------------------
def init_params(key):
    """Deterministic, PyTorch-style uniform(+-1/sqrt(fan_in)) init."""
    params = {}
    key, k = jax.random.split(key)
    params["embedding"] = jax.random.normal(k, (NUM_DISEASES, EMBEDDING_DIM),
                                            jnp.float32)

    dims = [EMBEDDING_DIM + INPUT_DIM] + HIDDEN_DIMS
    layers = []
    for li in range(len(HIDDEN_DIMS)):
        fan_in, fan_out = dims[li], dims[li + 1]
        bound = 1.0 / jnp.sqrt(fan_in)
        key, kw, kb, km, kv, kg, kbe = jax.random.split(key, 7)
        w = jax.random.uniform(kw, (fan_in, fan_out), jnp.float32, -bound, bound)
        b = jax.random.uniform(kb, (1, fan_out), jnp.float32, -bound, bound)
        run_mean = 0.1 * jax.random.normal(km, (1, fan_out), jnp.float32)
        run_var = jnp.abs(jax.random.normal(kv, (1, fan_out), jnp.float32)) + 0.5
        gamma = 1.0 + 0.1 * jax.random.normal(kg, (1, fan_out), jnp.float32)
        beta = 0.1 * jax.random.normal(kbe, (1, fan_out), jnp.float32)
        # Fold BN (eval) into affine scale/shift.
        scale = gamma / jnp.sqrt(run_var + BN_EPS)
        shift = beta - run_mean * scale
        layers.append((w, b, scale, shift))
    params["hidden"] = layers

    def linear(key, fan_in, fan_out):
        bound = 1.0 / jnp.sqrt(fan_in)
        kw, kb = jax.random.split(key)
        w = jax.random.uniform(kw, (fan_in, fan_out), jnp.float32, -bound, bound)
        b = jax.random.uniform(kb, (1, fan_out), jnp.float32, -bound, bound)
        return w, b

    key, k1, k2 = jax.random.split(key, 3)
    params["bottleneck"] = linear(k1, HIDDEN_DIMS[-1], BOTTLENECK)
    params["out"] = linear(k2, BOTTLENECK, OUTPUT_DIM)
    return params


def pack_params(params):
    """Fold embedding into layer 1 and each BN affine into the NEXT layer, then
    pack everything into one tightly packed bf16 weight slab + one f32 vector slab."""
    emb = params["embedding"]                                  # (10, 16)
    (w1, b1, sc1, sh1), (w2, b2, sc2, sh2), (w3, b3, sc3, sh3), \
        (w4, b4, sc4, sh4), (w5, b5, sc5, sh5) = params["hidden"]
    wb, bb = params["bottleneck"]                              # (64,1), (1,1)
    wo, bo = params["out"]                                     # (1,4), (1,4)

    # Embedding folded into layer 1; fused K=64 weight: rows 0..47 feature
    # weights, rows 48..57 = emb @ W1[:16,:], rows 58..63 zero.
    emb_w1 = emb @ w1[:EMBEDDING_DIM, :]                       # (10, 256)
    w1c = jnp.zeros((FEAT_PAD, HIDDEN_DIMS[0]), jnp.float32)
    w1c = w1c.at[:INPUT_DIM].set(w1[EMBEDDING_DIM:, :])
    w1c = w1c.at[INPUT_DIM:INPUT_DIM + NUM_DISEASES].set(emb_w1)

    # BN_i (eval) folded into layer i+1:  W' = scale[:,None]*W, b' = b + shift@W.
    def fold(sc, sh, w, b):
        return sc.reshape(-1, 1) * w, b + sh @ w

    w2f, b2f = fold(sc1, sh1, w2, b2)                          # (256,128)
    w3f, b3f = fold(sc2, sh2, w3, b3)                          # (128,128)
    w4f, b4f = fold(sc3, sh3, w4, b4)                          # (128, 64)
    w5f, b5f = fold(sc4, sh4, w5, b5)                          # ( 64, 64)
    wbf, bbf = fold(sc5, sh5, wb, bb)                          # (64,1), (1,1)

    # Tightly packed weight slab, bf16.
    w_slab = jnp.zeros((W_ROWS, W_COLS), jnp.float32)
    w_slab = w_slab.at[R_W1:R_W1 + FEAT_PAD, 0:256].set(w1c)
    w_slab = w_slab.at[R_W2:R_W2 + 256, 0:128].set(w2f)
    w_slab = w_slab.at[R_W3:R_W3 + 128, 128:256].set(w3f)
    w_slab = w_slab.at[R_W4:R_W4 + 128, 128:192].set(w4f)
    w_slab = w_slab.at[R_W5:R_W5 + 64, 0:64].set(w5f)
    w_slab = w_slab.astype(jnp.bfloat16)

    def row(a):
        a = a.astype(jnp.float32).reshape(1, -1)
        return jnp.pad(a, ((0, 0), (0, W_COLS - a.shape[1])))

    v_rows = [row(b1), row(b2f), row(b3f), row(b4f), row(b5f),
              row(wbf.T),        # row 5: bottleneck weight as a row vector
              row(bbf),          # row 6: bottleneck bias (col 0)
              row(wo),           # row 7: output weight row (cols 0:4)
              row(bo)]           # row 8: output bias (cols 0:4)
    v_slab = jnp.concatenate(
        v_rows + [jnp.zeros((V_ROWS - len(v_rows), W_COLS), jnp.float32)], axis=0)
    return w_slab, v_slab


# --------------------------------- wrapper -----------------------------------
@jax.jit
def forward(disease_ids, features, w_slab, v_slab):
    b = disease_ids.shape[0]
    # Batch tile: small batches -> single block padded to a multiple of 8;
    # large batches -> 256..1024-row blocks, keeping >=2 blocks so the
    # 'parallel' grid axis can use both v7x TensorCores.
    if b <= 256:
        tb = max(8, ((b + 7) // 8) * 8)
    else:
        tb = min(1024, max(256, (((b + 255) // 256) * 256) // 2))
    b_pad = ((b + tb - 1) // tb) * tb

    # Single f32 input block: lanes 0..47 features, lanes 48..63 the disease id
    # broadcast (exact in f32 for ids 0..9); one-hot is built in-kernel.
    feats = features.astype(jnp.float32)
    idcol = disease_ids.astype(jnp.float32).reshape(b, 1)
    x = jnp.concatenate(
        [feats, jnp.broadcast_to(idcol, (b, EMBEDDING_DIM))], axis=1)  # (b, 64)
    if b_pad != b:
        x = jnp.pad(x, ((0, b_pad - b), (0, 0)))

    out = pl.pallas_call(
        _mlp_kernel,
        out_shape=jax.ShapeDtypeStruct((b_pad, OUTPUT_DIM), jnp.float32),
        grid_spec=pltpu.PrefetchScalarGridSpec(
            num_scalar_prefetch=0,
            grid=(b_pad // tb,),
            in_specs=[
                pl.BlockSpec((tb, FEAT_PAD), lambda i: (i, 0)),   # feats+id
                pl.BlockSpec((W_ROWS, W_COLS), lambda i: (0, 0)), # bf16 weights
                pl.BlockSpec((V_ROWS, W_COLS), lambda i: (0, 0)), # f32 bias slab
            ],
            out_specs=pl.BlockSpec((tb, OUTPUT_DIM), lambda i: (i, 0)),
        ),
        compiler_params=pltpu.CompilerParams(
            dimension_semantics=("parallel",)),
    )(x, w_slab, v_slab)
    return out[:b]


# ------------------------------ pure-JAX reference ---------------------------
def forward_ref(disease_ids, features, params):
    emb = jnp.take(params["embedding"], disease_ids, axis=0)
    h = jnp.concatenate([emb, features.astype(jnp.float32)], axis=1)
    for w, b, sc, sh in params["hidden"]:
        h = jnp.maximum(h @ w + b, 0.0) * sc + sh   # Linear -> ReLU -> BN(eval)
    wb, bb = params["bottleneck"]
    z = h @ wb + bb
    z = jnp.where(z > 20.0, z, jnp.log1p(jnp.exp(jnp.minimum(z, 20.0))))
    wo, bo = params["out"]
    return z @ wo + bo


# ----------------------------------- main -------------------------------------
if __name__ == "__main__":
    key = jax.random.PRNGKey(0)
    kp, kd, kf = jax.random.split(key, 3)

    params = init_params(kp)
    w_slab, v_slab = pack_params(params)

    disease_ids = jax.random.randint(kd, (BATCH,), 0, NUM_DISEASES, jnp.int32)
    features = jax.random.normal(kf, (BATCH, INPUT_DIM), jnp.float32)

    out = jax.block_until_ready(forward(disease_ids, features, w_slab, v_slab))

    ref = forward_ref(disease_ids, features, params)
    assert out.shape == (BATCH, OUTPUT_DIM), out.shape
    # bf16 weights/activations at the MXU (f32 accumulation) are a deliberate
    # numerics tradeoff; tolerance reflects bf16 rounding + folding reassociation.
    assert jnp.allclose(out, ref, atol=2e-2, rtol=2e-2), (out, ref)

    print("KERNEL_OK")
</pallas_src>

<mosaic_0001>
module attributes {stable_mosaic.version = 11 : i64} {
  func.func @_mlp_kernel(%arg0: i32, %arg1: memref<8x64xf32, #tpu.memory_space<vmem>>, %arg2: memref<384x256xbf16, #tpu.memory_space<vmem>>, %arg3: memref<16x256xf32, #tpu.memory_space<vmem>>, %arg4: memref<8x4xf32, #tpu.memory_space<vmem>>) attributes {dimension_semantics = [#tpu.dimension_semantics<parallel>], iteration_bounds = array<i64: 1>, scalar_prefetch = 0 : i64, scratch_operands = 0 : i64, tpu.core_type = #tpu.core_type<tc>, window_params = [{transform_indices = @transform_0, window_bounds = array<i64: 8, 64>}, {pipeline_mode = #tpu.pipeline_mode<synchronous>, transform_indices = @transform_1, window_bounds = array<i64: 384, 256>}, {pipeline_mode = #tpu.pipeline_mode<synchronous>, transform_indices = @transform_2, window_bounds = array<i64: 16, 256>}, {transform_indices = @transform_3, window_bounds = array<i64: 8, 4>}]} {
    %c0 = arith.constant 0 : index
    %c0_0 = arith.constant 0 : index
    %0 = vector.load %arg3[%c0, %c0_0] : memref<16x256xf32, #tpu.memory_space<vmem>>, vector<16x256xf32>
    %c0_1 = arith.constant 0 : index
    %c0_2 = arith.constant 0 : index
    %1 = vector.load %arg1[%c0_1, %c0_2] : memref<8x64xf32, #tpu.memory_space<vmem>>, vector<8x64xf32>
    %2 = tpu.iota {dimensions = array<i32: 1>} : vector<8x64xi32>
    %3 = arith.sitofp %2 : vector<8x64xi32> to vector<8x64xf32>
    %cst = arith.constant 4.800000e+01 : f32
    %4 = vector.broadcast %cst : f32 to vector<8x64xf32>
    %5 = arith.cmpf olt, %3, %4 : vector<8x64xf32>
    %cst_3 = arith.constant 4.800000e+01 : f32
    %6 = vector.broadcast %cst_3 : f32 to vector<8x64xf32>
    %7 = arith.subf %3, %6 : vector<8x64xf32>
    %8 = arith.cmpf oeq, %1, %7 : vector<8x64xf32>
    %9 = arith.extui %8 : vector<8x64xi1> to vector<8x64xi32>
    %10 = arith.sitofp %9 : vector<8x64xi32> to vector<8x64xf32>
    %11 = arith.select %5, %1, %10 : vector<8x64xi1>, vector<8x64xf32>
    %12 = arith.truncf %11 : vector<8x64xf32> to vector<8x64xbf16>
    %c0_4 = arith.constant 0 : index
    %c0_5 = arith.constant 0 : index
    %13 = vector.load %arg2[%c0_4, %c0_5] : memref<384x256xbf16, #tpu.memory_space<vmem>>, vector<64x256xbf16>
    %cst_6 = arith.constant dense<0.000000e+00> : vector<8x256xf32>
    %14 = tpu.matmul %12, %13, %cst_6 {dimension_numbers = #tpu.dot_dimension_numbers<[1], [0], [0], [1], [0, 0, 1, 1], [], []>} : vector<8x64xbf16>, vector<64x256xbf16>, vector<8x256xf32> -> vector<8x256xf32>
    %15 = vector.extract_strided_slice %0 {offsets = [0, 0], sizes = [1, 256], strides = [1, 1]} : vector<16x256xf32> to vector<1x256xf32>
    %16 = vector.broadcast %15 : vector<1x256xf32> to vector<8x256xf32>
    %17 = arith.addf %14, %16 : vector<8x256xf32>
    %cst_7 = arith.constant 0.000000e+00 : f32
    %18 = vector.broadcast %cst_7 : f32 to vector<8x256xf32>
    %19 = arith.maximumf %17, %18 : vector<8x256xf32>
    %20 = arith.truncf %19 : vector<8x256xf32> to vector<8x256xbf16>
    %c64 = arith.constant 64 : index
    %c0_8 = arith.constant 0 : index
    %21 = vector.load %arg2[%c64, %c0_8] : memref<384x256xbf16, #tpu.memory_space<vmem>>, vector<256x128xbf16>
    %cst_9 = arith.constant dense<0.000000e+00> : vector<8x128xf32>
    %22 = tpu.matmul %20, %21, %cst_9 {dimension_numbers = #tpu.dot_dimension_numbers<[1], [0], [0], [1], [0, 0, 1, 1], [], []>} : vector<8x256xbf16>, vector<256x128xbf16>, vector<8x128xf32> -> vector<8x128xf32>
    %23 = vector.extract_strided_slice %0 {offsets = [1, 0], sizes = [1, 128], strides = [1, 1]} : vector<16x256xf32> to vector<1x128xf32>
    %24 = vector.broadcast %23 : vector<1x128xf32> to vector<8x128xf32>
    %25 = arith.addf %22, %24 : vector<8x128xf32>
    %cst_10 = arith.constant 0.000000e+00 : f32
    %26 = vector.broadcast %cst_10 : f32 to vector<8x128xf32>
    %27 = arith.maximumf %25, %26 : vector<8x128xf32>
    %28 = arith.truncf %27 : vector<8x128xf32> to vector<8x128xbf16>
    %c64_11 = arith.constant 64 : index
    %c128 = arith.constant 128 : index
    %29 = vector.load %arg2[%c64_11, %c128] : memref<384x256xbf16, #tpu.memory_space<vmem>>, vector<128x128xbf16>
    %cst_12 = arith.constant dense<0.000000e+00> : vector<8x128xf32>
    %30 = tpu.matmul %28, %29, %cst_12 {dimension_numbers = #tpu.dot_dimension_numbers<[1], [0], [0], [1], [0, 0, 1, 1], [], []>} : vector<8x128xbf16>, vector<128x128xbf16>, vector<8x128xf32> -> vector<8x128xf32>
    %31 = vector.extract_strided_slice %0 {offsets = [2, 0], sizes = [1, 128], strides = [1, 1]} : vector<16x256xf32> to vector<1x128xf32>
    %32 = vector.broadcast %31 : vector<1x128xf32> to vector<8x128xf32>
    %33 = arith.addf %30, %32 : vector<8x128xf32>
    %cst_13 = arith.constant 0.000000e+00 : f32
    %34 = vector.broadcast %cst_13 : f32 to vector<8x128xf32>
    %35 = arith.maximumf %33, %34 : vector<8x128xf32>
    %36 = arith.truncf %35 : vector<8x128xf32> to vector<8x128xbf16>
    %c192 = arith.constant 192 : index
    %c128_14 = arith.constant 128 : index
    %37 = vector.load %arg2[%c192, %c128_14] : memref<384x256xbf16, #tpu.memory_space<vmem>>, vector<128x64xbf16>
    %cst_15 = arith.constant dense<0.000000e+00> : vector<8x64xf32>
    %38 = tpu.matmul %36, %37, %cst_15 {dimension_numbers = #tpu.dot_dimension_numbers<[1], [0], [0], [1], [0, 0, 1, 1], [], []>} : vector<8x128xbf16>, vector<128x64xbf16>, vector<8x64xf32> -> vector<8x64xf32>
    %39 = vector.extract_strided_slice %0 {offsets = [3, 0], sizes = [1, 64], strides = [1, 1]} : vector<16x256xf32> to vector<1x64xf32>
    %40 = vector.broadcast %39 : vector<1x64xf32> to vector<8x64xf32>
    %41 = arith.addf %38, %40 : vector<8x64xf32>
    %cst_16 = arith.constant 0.000000e+00 : f32
    %42 = vector.broadcast %cst_16 : f32 to vector<8x64xf32>
    %43 = arith.maximumf %41, %42 : vector<8x64xf32>
    %44 = arith.truncf %43 : vector<8x64xf32> to vector<8x64xbf16>
    %c320 = arith.constant 320 : index
    %c0_17 = arith.constant 0 : index
    %45 = vector.load %arg2[%c320, %c0_17] : memref<384x256xbf16, #tpu.memory_space<vmem>>, vector<64x64xbf16>
    %cst_18 = arith.constant dense<0.000000e+00> : vector<8x64xf32>
    %46 = tpu.matmul %44, %45, %cst_18 {dimension_numbers = #tpu.dot_dimension_numbers<[1], [0], [0], [1], [0, 0, 1, 1], [], []>} : vector<8x64xbf16>, vector<64x64xbf16>, vector<8x64xf32> -> vector<8x64xf32>
    %47 = vector.extract_strided_slice %0 {offsets = [4, 0], sizes = [1, 64], strides = [1, 1]} : vector<16x256xf32> to vector<1x64xf32>
    %48 = vector.broadcast %47 : vector<1x64xf32> to vector<8x64xf32>
    %49 = arith.addf %46, %48 : vector<8x64xf32>
    %cst_19 = arith.constant 0.000000e+00 : f32
    %50 = vector.broadcast %cst_19 : f32 to vector<8x64xf32>
    %51 = arith.maximumf %49, %50 : vector<8x64xf32>
    %52 = vector.extract_strided_slice %0 {offsets = [5, 0], sizes = [1, 64], strides = [1, 1]} : vector<16x256xf32> to vector<1x64xf32>
    %53 = vector.broadcast %52 : vector<1x64xf32> to vector<8x64xf32>
    %54 = arith.mulf %51, %53 : vector<8x64xf32>
    %cst_20 = arith.constant dense<0.000000e+00> : vector<8xf32>
    %55 = vector.multi_reduction <add>, %54, %cst_20 [1] : vector<8x64xf32> to vector<8xf32>
    %56 = vector.shape_cast %55 : vector<8xf32> to vector<8x1xf32>
    %57 = vector.extract_strided_slice %0 {offsets = [6, 0], sizes = [1, 1], strides = [1, 1]} : vector<16x256xf32> to vector<1x1xf32>
    %58 = vector.broadcast %57 : vector<1x1xf32> to vector<8x1xf32>
    %59 = arith.addf %56, %58 : vector<8x1xf32>
    %cst_21 = arith.constant 2.000000e+01 : f32
    %60 = vector.broadcast %cst_21 : f32 to vector<8x1xf32>
    %61 = arith.cmpf ogt, %59, %60 : vector<8x1xf32>
    %cst_22 = arith.constant 2.000000e+01 : f32
    %62 = vector.broadcast %cst_22 : f32 to vector<8x1xf32>
    %63 = arith.minimumf %59, %62 : vector<8x1xf32>
    %64 = math.exp %63 : vector<8x1xf32>
    %65 = math.log1p %64 : vector<8x1xf32>
    %66 = arith.select %61, %59, %65 : vector<8x1xi1>, vector<8x1xf32>
    %67 = vector.extract_strided_slice %0 {offsets = [7, 0], sizes = [1, 4], strides = [1, 1]} : vector<16x256xf32> to vector<1x4xf32>
    %68 = vector.broadcast %66 : vector<8x1xf32> to vector<8x4xf32>
    %69 = vector.broadcast %67 : vector<1x4xf32> to vector<8x4xf32>
    %70 = arith.mulf %68, %69 : vector<8x4xf32>
    %71 = vector.extract_strided_slice %0 {offsets = [8, 0], sizes = [1, 4], strides = [1, 1]} : vector<16x256xf32> to vector<1x4xf32>
    %72 = vector.broadcast %71 : vector<1x4xf32> to vector<8x4xf32>
    %73 = arith.addf %70, %72 : vector<8x4xf32>
    %c0_23 = arith.constant 0 : index
    %c0_24 = arith.constant 0 : index
    %74 = vector.load %arg4[%c0_23, %c0_24] : memref<8x4xf32, #tpu.memory_space<vmem>>, vector<8x4xf32>
    tpu.vector_store %arg4[%c0_23, %c0_24], %73 {strides = array<i32>} : memref<8x4xf32, #tpu.memory_space<vmem>>, vector<8x4xf32>,
    return
  }
  func.func @transform_0(%arg0: i32) -> (i32, i32) {
    %c0_i32 = arith.constant 0 : i32
    %c0_i32_0 = arith.constant 0 : i32
    return %arg0, %c0_i32 : i32, i32
  }
  func.func @transform_1(%arg0: i32) -> (i32, i32) {
    %c0_i32 = arith.constant 0 : i32
    %c0_i32_0 = arith.constant 0 : i32
    %c0_i32_1 = arith.constant 0 : i32
    return %c0_i32, %c0_i32_0 : i32, i32
  }
  func.func @transform_2(%arg0: i32) -> (i32, i32) {
    %c0_i32 = arith.constant 0 : i32
    %c0_i32_0 = arith.constant 0 : i32
    %c0_i32_1 = arith.constant 0 : i32
    return %c0_i32, %c0_i32_0 : i32, i32
  }
  func.func @transform_3(%arg0: i32) -> (i32, i32) {
    %c0_i32 = arith.constant 0 : i32
    %c0_i32_0 = arith.constant 0 : i32
    return %arg0, %c0_i32 : i32, i32
  }
}

</mosaic_0001>

<llo_original>
// kernel: forward.1
$region0: #{forward.1}
  #allocation0 [shape = 'u32[]', space=smem, size = 0x4, offset = 0x4, fixed_abs, tag = 'smem constant byte address 0x4 - core index']
  #allocation1 [shape = 'u32[144,128]{1,0:T(1,128)}', space=vmem, size = 0x12000, scoped, tag = 'internal scratch']
  %s0 = inlined_call_operand.vmem [shape: f32[8,64], index: 0, kind: input, shape index: {}]
  %s1 = inlined_call_operand.hbm [shape: bf16[384,256], index: 1, kind: input, shape index: {}]
  %s2 = inlined_call_operand.vmem [shape: f32[16,256], index: 2, kind: input, shape index: {}]
  %s3 = inlined_call_operand.vmem [shape: f32[8,4], index: 3, kind: output, shape index: {}]
  %s4 = sld [smem:[#allocation0]]
  $region26: #{forward.1} parent=0
    _
  %s6 = ssub.s32 1, %s4
  %s7 = scalar_select 0, %s6, %s4
  $region1: #{forward.1} parent=0
    #allocation2 [shape = 'u8[196608]{0}', space=vmem, size = 0x30000, scoped, tag = 'input window, operand 1, single buffered']
    #allocation3 [shape = 's32[1]{0}', space=sflag, size = 0x4, scoped, tag = 'scoped memory for forward.1']
    %8 = vsyncpa [#allocation3], 0
    // Predicated region
    $region2: #{forward.1} parent=1 // pred_check
      _
    $region3: #{forward.1} parent=1 // pred_check_branch
      %10 = sbr.rel (0) target = $region5
    $region4: #{forward.1} parent=1 // pred_region
      _
    $region5: #{forward.1} parent=1 // pred_fallthru
      _
    // Predicated region
    $region6: #{forward.1} parent=1 // pred_check
      _
    $region7: #{forward.1} parent=1 // pred_check_branch
      %12 = sbr.rel (0) target = $region9
    $region8: #{forward.1} parent=1 // pred_region
      %s14 = ssub.s32 6144, 6144
      %15 = vsyncadd [#allocation3], %s14
      %s16 = sshll.u32 [#allocation2], 4
      %s17 = int_to_ptr.vmem [resolvable:$true] %s16
      %22 = dma.hbm_to_vmem [thread:$0]  %s1, 6144, %s17, [#allocation3], 128, 128, 8
    $region9: #{forward.1} parent=1 // pred_fallthru
      _
    // Predicated region
    $region10: #{forward.1} parent=1 // pred_check
      _
    $region11: #{forward.1} parent=1 // pred_check_branch
      %24 = sbr.rel (0) target = $region13
    $region12: #{forward.1} parent=1 // pred_region
      _
    $region13: #{forward.1} parent=1 // pred_fallthru
      _
    // Predicated region
    $region14: #{forward.1} parent=1 // pred_check
      _
    $region15: #{forward.1} parent=1 // pred_check_branch
      %26 = sbr.rel (0) target = $region17
    $region16: #{forward.1} parent=1 // pred_region
      %27 = dma.done [#allocation3], 6144
    $region17: #{forward.1} parent=1 // pred_fallthru
      _
    %v29 = vld [vmem:[%s2] sm:$0xff]
    %v30 = vld [vmem:[%s2 + $0x8] sm:$0xff]
    %v31 = vld [vmem:[%s2 + $0x10] sm:$0xff]
    %v32 = vld [vmem:[%s0] sm:$0xff]
    %v33 = vlaneseq
    %v34 = vand.u32 %v33, 127
    %v35 = vcvt.s32.f32 %v34
    %vm36 = vcmp.lt.f32.partialorder %v35, 48.0
    %v37 = vsub.f32 %v35, 48.0
    %vm38 = vcmp.eq.f32.partialorder %v32, %v37
    %v39 = vsel %vm38, 1, 0
    %v40 = vcvt.s32.f32 %v39
    %v41 = vsel %vm36, %v32, %v40
    %v42 = vpack.c.bf16 %v41, %v41
    %v43 = vld [vmem:[#allocation2] sm:$0xff]
    %v44 = vld [vmem:[#allocation2 + $0x8] sm:$0xff]
    %v45 = vld [vmem:[#allocation2 + $0x10] sm:$0xff]
    %v46 = vld [vmem:[#allocation2 + $0x18] sm:$0xff]
    %v47 = vld [vmem:[#allocation2 + $0x20] sm:$0xff]
    %v48 = vld [vmem:[#allocation2 + $0x28] sm:$0xff]
    %v49 = vld [vmem:[#allocation2 + $0x30] sm:$0xff]
    %v50 = vld [vmem:[#allocation2 + $0x38] sm:$0xff]
    %v51 = vlaneseq
    %v52 = vshrl.u32 %v51, 7
    %v53 = vsub.s32 0, %v52
    %v54 = vrot.slane %v29, %v53
    %v55 = vlaneseq
    %v56 = vshrl.u32 %v55, 7
    %v57 = vsub.s32 0, %v56
    %v58 = vrot.slane %v30, %v57
    %v67 = vunpack.c.l.b16 %v43
    %v68 = vunpack.c.h.b16 %v43
    %v69 = vunpack.c.l.b16 %v44
    %v70 = vunpack.c.h.b16 %v44
    %v71 = vunpack.c.l.b16 %v45
    %v72 = vunpack.c.h.b16 %v45
    %v73 = vunpack.c.l.b16 %v46
    %v74 = vunpack.c.h.b16 %v46
    %v75 = vunpack.c.l.b16 %v47
    %v76 = vunpack.c.h.b16 %v47
    %v77 = vunpack.c.l.b16 %v48
    %v78 = vunpack.c.h.b16 %v48
    %v79 = vunpack.c.l.b16 %v49
    %v80 = vunpack.c.h.b16 %v49
    %v81 = vunpack.c.l.b16 %v50
    %v82 = vunpack.c.h.b16 %v50
    %v83 = vpack.c.b16 %v69, %v67
    %v84 = vpack.c.b16 %v70, %v68
    %v85 = vpack.c.b16 %v73, %v71
    %v86 = vpack.c.b16 %v74, %v72
    %v87 = vpack.c.b16 %v77, %v75
    %v88 = vpack.c.b16 %v78, %v76
    %v89 = vpack.c.b16 %v81, %v79
    %v90 = vpack.c.b16 %v82, %v80
    %vm99 = vcmask 523264
    %v101 = vsel %vm99, %v42, 0
    %103 = vmatprep.subr.bf16.mxu0 %v84
    %104 = vmatpush1.bf16.msra.mxu0 %v83
    %105 = vmatprep.subr.bf16.mxu0 %v86
    %106 = vmatpush1.bf16.msra.mxu0 %v85
    %107 = vmatprep.subr.bf16.mxu0 %v88
    %108 = vmatpush1.bf16.msra.mxu0 %v87
    %109 = vmatprep.subr.bf16.mxu0 %v90
    %110 = vmatpush1.bf16.msra.mxu0 %v89
    %111 = vmatprep.subr.bf16.mxu0 0
    %112 = vmatpush1.bf16.msra.mxu0 0
    %113 = vmatprep.subr.bf16.mxu0 0
    %114 = vmatpush1.bf16.msra.mxu0 0
    %115 = vmatprep.subr.bf16.mxu0 0
    %116 = vmatpush1.bf16.msra.mxu0 0
    %117 = vmatprep.subr.bf16.mxu0 0
    %118 = vmatpush1.bf16.msra.mxu0 0
    %119 = vmatprep.subr.bf16.mxu0 0
    %120 = vmatpush1.bf16.msra.mxu0 0
    %121 = vmatprep.subr.bf16.mxu0 0
    %122 = vmatpush1.bf16.msra.mxu0 0
    %123 = vmatprep.subr.bf16.mxu0 0
    %124 = vmatpush1.bf16.msra.mxu0 0
    %125 = vmatprep.subr.bf16.mxu0 0
    %126 = vmatpush1.bf16.msra.mxu0 0
    %127 = vmatprep.subr.bf16.mxu0 0
    %128 = vmatpush1.bf16.msra.mxu0 0
    %129 = vmatprep.subr.bf16.mxu0 0
    %130 = vmatpush1.bf16.msra.mxu0 0
    %131 = vmatprep.subr.bf16.mxu0 0
    %132 = vmatpush1.bf16.msra.mxu0 0
    %133 = vmatprep.subr.bf16.mxu0 0
    %134 = vmatpush1.bf16.msra.mxu0 0
    %135 = vmatprep.mubr.bf16.mxu0 0
    %136 = vmatmul.mubr.bf16.gmra.mrb[0].mxu0 %v101
    %v137 = vpop.f32.mrb[0].mxu0
    %v138 = vadd.f32 %v54, %v137
    %v139 = vpop.f32.mrb[0].mxu0
    %v140 = vadd.f32 %v58, %v139
    %v141 = vpop.f32.mrb[0].mxu0
    %v142 = vpop.f32.mrb[0].mxu0
    %143 = vdwg.mxu0
    %v144 = vmax.f32 %v138, 0.0
    %v145 = vmax.f32 %v140, 0.0
    %v146 = vpack.c.bf16 %v144, %v144
    %v147 = vpack.c.bf16 %v145, %v145
    %v148 = vld [vmem:[#allocation2 + $0x40] sm:$0xf]
    %v149 = vld [vmem:[#allocation2 + $0x48] sm:$0xf]
    %v150 = vld [vmem:[#allocation2 + $0x50] sm:$0xf]
    %v151 = vld [vmem:[#allocation2 + $0x58] sm:$0xf]
    %v152 = vld [vmem:[#allocation2 + $0x60] sm:$0xf]
    %v153 = vld [vmem:[#allocation2 + $0x68] sm:$0xf]
    %v154 = vld [vmem:[#allocation2 + $0x70] sm:$0xf]
    %v155 = vld [vmem:[#allocation2 + $0x78] sm:$0xf]
    %v156 = vld [vmem:[#allocation2 + $0x80] sm:$0xf]
    %v157 = vld [vmem:[#allocation2 + $0x88] sm:$0xf]
    %v158 = vld [vmem:[#allocation2 + $0x90] sm:$0xf]
    %v159 = vld [vmem:[#allocation2 + $0x98] sm:$0xf]
    %v160 = vld [vmem:[#allocation2 + $0xa0] sm:$0xf]
    %v161 = vld [vmem:[#allocation2 + $0xa8] sm:$0xf]
    %v162 = vld [vmem:[#allocation2 + $0xb0] sm:$0xf]
    %v163 = vld [vmem:[#allocation2 + $0xb8] sm:$0xf]
    %v164 = vld [vmem:[#allocation2 + $0xc0] sm:$0xf]
    %v165 = vld [vmem:[#allocation2 + $0xc8] sm:$0xf]
    %v166 = vld [vmem:[#allocation2 + $0xd0] sm:$0xf]
    %v167 = vld [vmem:[#allocation2 + $0xd8] sm:$0xf]
    %v168 = vld [vmem:[#allocation2 + $0xe0] sm:$0xf]
    %v169 = vld [vmem:[#allocation2 + $0xe8] sm:$0xf]
    %v170 = vld [vmem:[#allocation2 + $0xf0] sm:$0xf]
    %v171 = vld [vmem:[#allocation2 + $0xf8] sm:$0xf]
    %v172 = vld [vmem:[#allocation2 + $0x100] sm:$0xf]
    %v173 = vld [vmem:[#allocation2 + $0x108] sm:$0xf]
    %v174 = vld [vmem:[#allocation2 + $0x110] sm:$0xf]
    %v175 = vld [vmem:[#allocation2 + $0x118] sm:$0xf]
    %v176 = vld [vmem:[#allocation2 + $0x120] sm:$0xf]
    %v177 = vld [vmem:[#allocation2 + $0x128] sm:$0xf]
    %v178 = vld [vmem:[#allocation2 + $0x130] sm:$0xf]
    %v179 = vld [vmem:[#allocation2 + $0x138] sm:$0xf]
    %v180 = vlaneseq
    %v181 = vshrl.u32 %v180, 7
    %v182 = vsub.s32 1, %v181
    %v183 = vrot.slane %v29, %v182
    %v216 = vunpack.c.l.b16 %v148
    %v217 = vunpack.c.l.b16 %v149
    %v218 = vunpack.c.l.b16 %v150
    %v219 = vunpack.c.l.b16 %v151
    %v220 = vunpack.c.l.b16 %v152
    %v221 = vunpack.c.l.b16 %v153
    %v222 = vunpack.c.l.b16 %v154
    %v223 = vunpack.c.l.b16 %v155
    %v224 = vunpack.c.l.b16 %v156
    %v225 = vunpack.c.l.b16 %v157
    %v226 = vunpack.c.l.b16 %v158
    %v227 = vunpack.c.l.b16 %v159
    %v228 = vunpack.c.l.b16 %v160
    %v229 = vunpack.c.l.b16 %v161
    %v230 = vunpack.c.l.b16 %v162
    %v231 = vunpack.c.l.b16 %v163
    %v232 = vunpack.c.l.b16 %v164
    %v233 = vunpack.c.l.b16 %v165
    %v234 = vunpack.c.l.b16 %v166
    %v235 = vunpack.c.l.b16 %v167
    %v236 = vunpack.c.l.b16 %v168
    %v237 = vunpack.c.l.b16 %v169
    %v238 = vunpack.c.l.b16 %v170
    %v239 = vunpack.c.l.b16 %v171
    %v240 = vunpack.c.l.b16 %v172
    %v241 = vunpack.c.l.b16 %v173
    %v242 = vunpack.c.l.b16 %v174
    %v243 = vunpack.c.l.b16 %v175
    %v244 = vunpack.c.l.b16 %v176
    %v245 = vunpack.c.l.b16 %v177
    %v246 = vunpack.c.l.b16 %v178
    %v247 = vunpack.c.l.b16 %v179
    %v248 = vpack.c.b16 %v217, %v216
    %v249 = vpack.c.b16 %v219, %v218
    %v250 = vpack.c.b16 %v221, %v220
    %v251 = vpack.c.b16 %v223, %v222
    %v252 = vpack.c.b16 %v225, %v224
    %v253 = vpack.c.b16 %v227, %v226
    %v254 = vpack.c.b16 %v229, %v228
    %v255 = vpack.c.b16 %v231, %v230
    %v256 = vpack.c.b16 %v233, %v232
    %v257 = vpack.c.b16 %v235, %v234
    %v258 = vpack.c.b16 %v237, %v236
    %v259 = vpack.c.b16 %v239, %v238
    %v260 = vpack.c.b16 %v241, %v240
    %v261 = vpack.c.b16 %v243, %v242
    %v262 = vpack.c.b16 %v245, %v244
    %v263 = vpack.c.b16 %v247, %v246
    %280 = vmatprep.subr.bf16.mxu0 0
    %281 = vmatpush1.bf16.msra.mxu0 %v248
    %282 = vmatprep.subr.bf16.mxu0 0
    %283 = vmatpush1.bf16.msra.mxu0 %v249
    %284 = vmatprep.subr.bf16.mxu0 0
    %285 = vmatpush1.bf16.msra.mxu0 %v250
    %286 = vmatprep.subr.bf16.mxu0 0
    %287 = vmatpush1.bf16.msra.mxu0 %v251
    %288 = vmatprep.subr.bf16.mxu0 0
    %289 = vmatpush1.bf16.msra.mxu0 %v252
    %290 = vmatprep.subr.bf16.mxu0 0
    %291 = vmatpush1.bf16.msra.mxu0 %v253
    %292 = vmatprep.subr.bf16.mxu0 0
    %293 = vmatpush1.bf16.msra.mxu0 %v254
    %294 = vmatprep.subr.bf16.mxu0 0
    %295 = vmatpush1.bf16.msra.mxu0 %v255
    %296 = vmatprep.subr.bf16.mxu0 0
    %297 = vmatpush1.bf16.msra.mxu0 %v256
    %298 = vmatprep.subr.bf16.mxu0 0
    %299 = vmatpush1.bf16.msra.mxu0 %v257
    %300 = vmatprep.subr.bf16.mxu0 0
    %301 = vmatpush1.bf16.msra.mxu0 %v258
    %302 = vmatprep.subr.bf16.mxu0 0
    %303 = vmatpush1.bf16.msra.mxu0 %v259
    %304 = vmatprep.subr.bf16.mxu0 0
    %305 = vmatpush1.bf16.msra.mxu0 %v260
    %306 = vmatprep.subr.bf16.mxu0 0
    %307 = vmatpush1.bf16.msra.mxu0 %v261
    %308 = vmatprep.subr.bf16.mxu0 0
    %309 = vmatpush1.bf16.msra.mxu0 %v262
    %310 = vmatprep.subr.bf16.mxu0 0
    %311 = vmatpush1.bf16.msra.mxu0 %v263
    %312 = vmatprep.mubr.bf16.mxu0 %v147
    %313 = vmatmul.mubr.bf16.gmra.mrb[0].mxu0 %v146
    %v314 = vpop.f32.mrb[0].mxu0
    %v315 = vadd.f32 %v183, %v314
    %v316 = vpop.f32.mrb[0].mxu0
    %v317 = vpop.f32.mrb[0].mxu0
    %v318 = vpop.f32.mrb[0].mxu0
    %319 = vdwg.mxu0
    %v320 = vmax.f32 %v315, 0.0
    %v321 = vpack.c.bf16 %v320, %v320
    %v322 = vld [vmem:[#allocation2 + $0x44] sm:$0xf]
    %v323 = vld [vmem:[#allocation2 + $0x4c] sm:$0xf]
    %v324 = vld [vmem:[#allocation2 + $0x54] sm:$0xf]
    %v325 = vld [vmem:[#allocation2 + $0x5c] sm:$0xf]
    %v326 = vld [vmem:[#allocation2 + $0x64] sm:$0xf]
    %v327 = vld [vmem:[#allocation2 + $0x6c] sm:$0xf]
    %v328 = vld [vmem:[#allocation2 + $0x74] sm:$0xf]
    %v329 = vld [vmem:[#allocation2 + $0x7c] sm:$0xf]
    %v330 = vld [vmem:[#allocation2 + $0x84] sm:$0xf]
    %v331 = vld [vmem:[#allocation2 + $0x8c] sm:$0xf]
    %v332 = vld [vmem:[#allocation2 + $0x94] sm:$0xf]
    %v333 = vld [vmem:[#allocation2 + $0x9c] sm:$0xf]
    %v334 = vld [vmem:[#allocation2 + $0xa4] sm:$0xf]
    %v335 = vld [vmem:[#allocation2 + $0xac] sm:$0xf]
    %v336 = vld [vmem:[#allocation2 + $0xb4] sm:$0xf]
    %v337 = vld [vmem:[#allocation2 + $0xbc] sm:$0xf]
    %v338 = vlaneseq
    %v339 = vshrl.u32 %v338, 7
    %v340 = vsub.s32 2, %v339
    %v341 = vrot.slane %v29, %v340
    %v358 = vunpack.c.l.b16 %v322
    %v359 = vunpack.c.l.b16 %v323
    %v360 = vunpack.c.l.b16 %v324
    %v361 = vunpack.c.l.b16 %v325
    %v362 = vunpack.c.l.b16 %v326
    %v363 = vunpack.c.l.b16 %v327
    %v364 = vunpack.c.l.b16 %v328
    %v365 = vunpack.c.l.b16 %v329
    %v366 = vunpack.c.l.b16 %v330
    %v367 = vunpack.c.l.b16 %v331
    %v368 = vunpack.c.l.b16 %v332
    %v369 = vunpack.c.l.b16 %v333
    %v370 = vunpack.c.l.b16 %v334
    %v371 = vunpack.c.l.b16 %v335
    %v372 = vunpack.c.l.b16 %v336
    %v373 = vunpack.c.l.b16 %v337
    %v374 = vpack.c.b16 %v359, %v358
    %v375 = vpack.c.b16 %v361, %v360
    %v376 = vpack.c.b16 %v363, %v362
    %v377 = vpack.c.b16 %v365, %v364
    %v378 = vpack.c.b16 %v367, %v366
    %v379 = vpack.c.b16 %v369, %v368
    %v380 = vpack.c.b16 %v371, %v370
    %v381 = vpack.c.b16 %v373, %v372
    %390 = vmatprep.subr.bf16.mxu0 0
    %391 = vmatpush1.bf16.msra.mxu0 %v374
    %392 = vmatprep.subr.bf16.mxu0 0
    %393 = vmatpush1.bf16.msra.mxu0 %v375
    %394 = vmatprep.subr.bf16.mxu0 0
    %395 = vmatpush1.bf16.msra.mxu0 %v376
    %396 = vmatprep.subr.bf16.mxu0 0
    %397 = vmatpush1.bf16.msra.mxu0 %v377
    %398 = vmatprep.subr.bf16.mxu0 0
    %399 = vmatpush1.bf16.msra.mxu0 %v378
    %400 = vmatprep.subr.bf16.mxu0 0
    %401 = vmatpush1.bf16.msra.mxu0 %v379
    %402 = vmatprep.subr.bf16.mxu0 0
    %403 = vmatpush1.bf16.msra.mxu0 %v380
    %404 = vmatprep.subr.bf16.mxu0 0
    %405 = vmatpush1.bf16.msra.mxu0 %v381
    %406 = vmatprep.subr.bf16.mxu0 0
    %407 = vmatpush1.bf16.msra.mxu0 0
    %408 = vmatprep.subr.bf16.mxu0 0
    %409 = vmatpush1.bf16.msra.mxu0 0
    %410 = vmatprep.subr.bf16.mxu0 0
    %411 = vmatpush1.bf16.msra.mxu0 0
    %412 = vmatprep.subr.bf16.mxu0 0
    %413 = vmatpush1.bf16.msra.mxu0 0
    %414 = vmatprep.subr.bf16.mxu0 0
    %415 = vmatpush1.bf16.msra.mxu0 0
    %416 = vmatprep.subr.bf16.mxu0 0
    %417 = vmatpush1.bf16.msra.mxu0 0
    %418 = vmatprep.subr.bf16.mxu0 0
    %419 = vmatpush1.bf16.msra.mxu0 0
    %420 = vmatprep.subr.bf16.mxu0 0
    %421 = vmatpush1.bf16.msra.mxu0 0
    %422 = vmatprep.mubr.bf16.mxu0 0
    %423 = vmatmul.mubr.bf16.gmra.mrb[0].mxu0 %v321
    %v424 = vpop.f32.mrb[0].mxu0
    %v425 = vadd.f32 %v341, %v424
    %v426 = vpop.f32.mrb[0].mxu0
    %v427 = vpop.f32.mrb[0].mxu0
    %v428 = vpop.f32.mrb[0].mxu0
    %429 = vdwg.mxu0
    %v430 = vmax.f32 %v425, 0.0
    %v431 = vpack.c.bf16 %v430, %v430
    %v432 = vld [vmem:[#allocation2 + $0xc4] sm:$0xf]
    %v433 = vld [vmem:[#allocation2 + $0xcc] sm:$0xf]
    %v434 = vld [vmem:[#allocation2 + $0xd4] sm:$0xf]
    %v435 = vld [vmem:[#allocation2 + $0xdc] sm:$0xf]
    %v436 = vld [vmem:[#allocation2 + $0xe4] sm:$0xf]
    %v437 = vld [vmem:[#allocation2 + $0xec] sm:$0xf]
    %v438 = vld [vmem:[#allocation2 + $0xf4] sm:$0xf]
    %v439 = vld [vmem:[#allocation2 + $0xfc] sm:$0xf]
    %v440 = vld [vmem:[#allocation2 + $0x104] sm:$0xf]
    %v441 = vld [vmem:[#allocation2 + $0x10c] sm:$0xf]
    %v442 = vld [vmem:[#allocation2 + $0x114] sm:$0xf]
    %v443 = vld [vmem:[#allocation2 + $0x11c] sm:$0xf]
    %v444 = vld [vmem:[#allocation2 + $0x124] sm:$0xf]
    %v445 = vld [vmem:[#allocation2 + $0x12c] sm:$0xf]
    %v446 = vld [vmem:[#allocation2 + $0x134] sm:$0xf]
    %v447 = vld [vmem:[#allocation2 + $0x13c] sm:$0xf]
    %v448 = vlaneseq
    %v449 = vshrl.u32 %v448, 7
    %v450 = vsub.s32 3, %v449
    %v451 = vrot.slane %v29, %v450
    %v468 = vunpack.c.l.b16 %v432
    %v469 = vunpack.c.l.b16 %v433
    %v470 = vunpack.c.l.b16 %v434
    %v471 = vunpack.c.l.b16 %v435
    %v472 = vunpack.c.l.b16 %v436
    %v473 = vunpack.c.l.b16 %v437
    %v474 = vunpack.c.l.b16 %v438
    %v475 = vunpack.c.l.b16 %v439
    %v476 = vunpack.c.l.b16 %v440
    %v477 = vunpack.c.l.b16 %v441
    %v478 = vunpack.c.l.b16 %v442
    %v479 = vunpack.c.l.b16 %v443
    %v480 = vunpack.c.l.b16 %v444
    %v481 = vunpack.c.l.b16 %v445
    %v482 = vunpack.c.l.b16 %v446
    %v483 = vunpack.c.l.b16 %v447
    %v484 = vpack.c.b16 %v469, %v468
    %v485 = vpack.c.b16 %v471, %v470
    %v486 = vpack.c.b16 %v473, %v472
    %v487 = vpack.c.b16 %v475, %v474
    %v488 = vpack.c.b16 %v477, %v476
    %v489 = vpack.c.b16 %v479, %v478
    %v490 = vpack.c.b16 %v481, %v480
    %v491 = vpack.c.b16 %v483, %v482
    %500 = vmatprep.subr.bf16.mxu0 0
    %501 = vmatpush1.bf16.msra.mxu0 %v484
    %502 = vmatprep.subr.bf16.mxu0 0
    %503 = vmatpush1.bf16.msra.mxu0 %v485
    %504 = vmatprep.subr.bf16.mxu0 0
    %505 = vmatpush1.bf16.msra.mxu0 %v486
    %506 = vmatprep.subr.bf16.mxu0 0
    %507 = vmatpush1.bf16.msra.mxu0 %v487
    %508 = vmatprep.subr.bf16.mxu0 0
    %509 = vmatpush1.bf16.msra.mxu0 %v488
    %510 = vmatprep.subr.bf16.mxu0 0
    %511 = vmatpush1.bf16.msra.mxu0 %v489
    %512 = vmatprep.subr.bf16.mxu0 0
    %513 = vmatpush1.bf16.msra.mxu0 %v490
    %514 = vmatprep.subr.bf16.mxu0 0
    %515 = vmatpush1.bf16.msra.mxu0 %v491
    %516 = vmatprep.subr.bf16.mxu0 0
    %517 = vmatpush1.bf16.msra.mxu0 0
    %518 = vmatprep.subr.bf16.mxu0 0
    %519 = vmatpush1.bf16.msra.mxu0 0
    %520 = vmatprep.subr.bf16.mxu0 0
    %521 = vmatpush1.bf16.msra.mxu0 0
    %522 = vmatprep.subr.bf16.mxu0 0
    %523 = vmatpush1.bf16.msra.mxu0 0
    %524 = vmatprep.subr.bf16.mxu0 0
    %525 = vmatpush1.bf16.msra.mxu0 0
    %526 = vmatprep.subr.bf16.mxu0 0
    %527 = vmatpush1.bf16.msra.mxu0 0
    %528 = vmatprep.subr.bf16.mxu0 0
    %529 = vmatpush1.bf16.msra.mxu0 0
    %530 = vmatprep.subr.bf16.mxu0 0
    %531 = vmatpush1.bf16.msra.mxu0 0
    %532 = vmatprep.mubr.bf16.mxu0 0
    %533 = vmatmul.mubr.bf16.gmra.mrb[0].mxu0 %v431
    %v534 = vpop.f32.mrb[0].mxu0
    %v535 = vadd.f32 %v451, %v534
    %v536 = vpop.f32.mrb[0].mxu0
    %v537 = vpop.f32.mrb[0].mxu0
    %v538 = vpop.f32.mrb[0].mxu0
    %539 = vdwg.mxu0
    %v540 = vmax.f32 %v535, 0.0
    %v541 = vpack.c.bf16 %v540, %v540
    %v542 = vld [vmem:[#allocation2 + $0x140] sm:$0xf]
    %v543 = vld [vmem:[#allocation2 + $0x148] sm:$0xf]
    %v544 = vld [vmem:[#allocation2 + $0x150] sm:$0xf]
    %v545 = vld [vmem:[#allocation2 + $0x158] sm:$0xf]
    %v546 = vld [vmem:[#allocation2 + $0x160] sm:$0xf]
    %v547 = vld [vmem:[#allocation2 + $0x168] sm:$0xf]
    %v548 = vld [vmem:[#allocation2 + $0x170] sm:$0xf]
    %v549 = vld [vmem:[#allocation2 + $0x178] sm:$0xf]
    %v550 = vlaneseq
    %v551 = vshrl.u32 %v550, 7
    %v552 = vsub.s32 4, %v551
    %v553 = vrot.slane %v29, %v552
    %v562 = vunpack.c.l.b16 %v542
    %v563 = vunpack.c.l.b16 %v543
    %v564 = vunpack.c.l.b16 %v544
    %v565 = vunpack.c.l.b16 %v545
    %v566 = vunpack.c.l.b16 %v546
    %v567 = vunpack.c.l.b16 %v547
    %v568 = vunpack.c.l.b16 %v548
    %v569 = vunpack.c.l.b16 %v549
    %v570 = vpack.c.b16 %v563, %v562
    %v571 = vpack.c.b16 %v565, %v564
    %v572 = vpack.c.b16 %v567, %v566
    %v573 = vpack.c.b16 %v569, %v568
    %v579 = vsel %vm99, %v541, 0
    %581 = vmatprep.subr.bf16.mxu0 0
    %582 = vmatpush1.bf16.msra.mxu0 %v570
    %583 = vmatprep.subr.bf16.mxu0 0
    %584 = vmatpush1.bf16.msra.mxu0 %v571
    %585 = vmatprep.subr.bf16.mxu0 0
    %586 = vmatpush1.bf16.msra.mxu0 %v572
    %587 = vmatprep.subr.bf16.mxu0 0
    %588 = vmatpush1.bf16.msra.mxu0 %v573
    %589 = vmatprep.subr.bf16.mxu0 0
    %590 = vmatpush1.bf16.msra.mxu0 0
    %591 = vmatprep.subr.bf16.mxu0 0
    %592 = vmatpush1.bf16.msra.mxu0 0
    %593 = vmatprep.subr.bf16.mxu0 0
    %594 = vmatpush1.bf16.msra.mxu0 0
    %595 = vmatprep.subr.bf16.mxu0 0
    %596 = vmatpush1.bf16.msra.mxu0 0
    %597 = vmatprep.subr.bf16.mxu0 0
    %598 = vmatpush1.bf16.msra.mxu0 0
    %599 = vmatprep.subr.bf16.mxu0 0
    %600 = vmatpush1.bf16.msra.mxu0 0
    %601 = vmatprep.subr.bf16.mxu0 0
    %602 = vmatpush1.bf16.msra.mxu0 0
    %603 = vmatprep.subr.bf16.mxu0 0
    %604 = vmatpush1.bf16.msra.mxu0 0
    %605 = vmatprep.subr.bf16.mxu0 0
    %606 = vmatpush1.bf16.msra.mxu0 0
    %607 = vmatprep.subr.bf16.mxu0 0
    %608 = vmatpush1.bf16.msra.mxu0 0
    %609 = vmatprep.subr.bf16.mxu0 0
    %610 = vmatpush1.bf16.msra.mxu0 0
    %611 = vmatprep.subr.bf16.mxu0 0
    %612 = vmatpush1.bf16.msra.mxu0 0
    %613 = vmatprep.mubr.bf16.mxu0 0
    %614 = vmatmul.mubr.bf16.gmra.mrb[0].mxu0 %v579
    %v615 = vpop.f32.mrb[0].mxu0
    %v616 = vadd.f32 %v553, %v615
    %v617 = vpop.f32.mrb[0].mxu0
    %v618 = vpop.f32.mrb[0].mxu0
    %v619 = vpop.f32.mrb[0].mxu0
    %620 = vdwg.mxu0
    %v621 = vmax.f32 %v616, 0.0
    %v622 = vlaneseq
    %v623 = vshrl.u32 %v622, 7
    %v624 = vsub.s32 5, %v623
    %v625 = vrot.slane %v29, %v624
    %v626 = vmul.f32 %v621, %v625
    %v627 = vsel %vm99, %v626, 0.0
    %628 = vadd.xlane.f32.xlu0 %v627
    %v629 = vpop.xlane.xlu0 %628
    %v630 = vlaneseq
    %v631 = vshrl.u32 %v630, 7
    %v632 = vsub.s32 6, %v631
    %v633 = vrot.slane %v29, %v632
    %v634 = vadd.f32 %v629, %v633
    %vm635 = vcmp.gt.f32.partialorder %v634, 20.0
    %v636 = vmin.f32 %v634, 20.0
    %v637 = vmul.f32 %v636, 1.442695
    %v638 = vpow.pop %v637
    %v639 = vadd.f32 %v638, 1.0
    %v640 = vlog2.pop %v639
    %v641 = vmul.f32 %v640, 0.6931472
    %v642 = vmul.f32 -0.5, %v638
    %v643 = vadd.f32 %v642, 1.0
    %v644 = vmul.f32 %v643, %v638
    %v645 = vand.u32 2147483647, %v638
    %vm646 = vcmp.lt.f32.partialorder %v645, 0.0004427343
    %v647 = vsel %vm646, %v644, %v641
    %v648 = vsel %vm635, %v634, %v647
    %650 = vset.pattern.permute.xlu0 0
    %651 = vperm.xlu0 %650, %v648
    %v652 = vpop.permute.xlu0 %651
    %v654 = vlaneseq
    %v655 = vshrl.u32 %v654, 7
    %v656 = vsub.s32 7, %v655
    %v657 = vrot.slane %v29, %v656
    %v658 = vmul.f32 %v652, %v657
    %v659 = vlaneseq
    %v660 = vshrl.u32 %v659, 7
    %v661 = vsub.s32 0, %v660
    %v662 = vrot.slane %v31, %v661
    %v663 = vadd.f32 %v658, %v662
    %vm664 = vcmask 31744
    %665 = vst.msk [vmem:[%s3] sm:$0xff] %vm664, %v663
    // Predicated region
    $region18: #{forward.1} parent=1 // pred_check
      _
    $region19: #{forward.1} parent=1 // pred_check_branch
      %667 = sbr.rel (0) target = $region21
    $region20: #{forward.1} parent=1 // pred_region
      _
    $region21: #{forward.1} parent=1 // pred_fallthru
      _
    // Predicated region
    $region22: #{forward.1} parent=1 // pred_check
      _
    $region23: #{forward.1} parent=1 // pred_check_branch
      %669 = sbr.rel (0) target = $region25
    $region24: #{forward.1} parent=1 // pred_region
      _
    $region25: #{forward.1} parent=1 // pred_fallthru
      _
    %670 = vsyncpa [#allocation3], 1

</llo_original>
